<compile_context>
chip_gen: v6e
topology: v6e:2x2x1
jax: 0.10.0
libtpu: 0.0.40
codegen_flags: <defaults>
</compile_context>

<pallas_src>
import functools

import jax
import jax.numpy as jnp
from jax.experimental import pallas as pl
from jax.experimental.pallas import tpu as pltpu

LANES = 128
TILE_ROWS_MAX = 2048   # 2048 * 128 * 4B = 1 MiB f32 per input per buffer
NUM_CORES = 2          # leading 'parallel' axis; no-op on 1-TC chips


def _charbonnier_kernel(x_ref, y_ref, out_ref, acc_ref, *, eps, full_rows,
                        tail_cols, inv_n, tile_rows, num_valid_blocks,
                        blocks_per_core):
    c = pl.program_id(0)              # core (parallel) axis
    i = pl.program_id(1)              # streaming (reduction) axis
    g = c * blocks_per_core + i       # global block index (unclamped)

    @pl.when(i == 0)
    def _init():
        acc_ref[...] = jnp.zeros_like(acc_ref)

    x = x_ref[...].astype(jnp.float32)
    y = y_ref[...].astype(jnp.float32)
    diff = x - y
    err = jnp.sqrt(diff * diff + eps)                 # (tile_rows, 128) f32

    # Hot path: fully-valid blocks, no masking; pure VPU adds into one vreg.
    @pl.when(g < num_valid_blocks - 1)
    def _hot():
        acc_ref[...] += err.reshape(tile_rows // 8, 8, LANES).sum(axis=0)

    # Tail path: last real block (and any duplicated out-of-range block on the
    # second core) -- mask padded / out-of-range elements before accumulating.
    @pl.when(g >= num_valid_blocks - 1)
    def _tail():
        row = g * tile_rows + jax.lax.broadcasted_iota(jnp.int32, err.shape, 0)
        col = jax.lax.broadcasted_iota(jnp.int32, err.shape, 1)
        valid = (row < full_rows) | ((row == full_rows) & (col < tail_cols))
        e = jnp.where(valid, err, 0.0)
        acc_ref[...] += e.reshape(tile_rows // 8, 8, LANES).sum(axis=0)

    # Finalize: one cross-lane/sublane reduce per core, scaled by 1/N.
    @pl.when(i == pl.num_programs(1) - 1)
    def _finalize():
        out_ref[...] = (jnp.sum(acc_ref[...]) * inv_n).reshape(1, 1, 1)


def l1_charbonnier_loss(x, y, eps=1e-6):
    assert x.shape == y.shape
    n = x.size
    xf = jnp.ravel(x)
    yf = jnp.ravel(y)

    # Pad only up to one (8,128) tile; n % 128 == 0 inputs need no pad at all.
    pad = (-n) % LANES
    rows = (n + pad) // LANES
    if rows < 8:                      # tiny inputs: round rows up to 8
        pad += (8 - rows) * LANES
        rows = 8
    if pad:
        xf = jnp.pad(xf, (0, pad))
        yf = jnp.pad(yf, (0, pad))

    x2 = xf.reshape(rows, LANES)
    y2 = yf.reshape(rows, LANES)

    tile_rows = TILE_ROWS_MAX if rows >= TILE_ROWS_MAX else (rows // 8) * 8
    blocks = pl.cdiv(rows, tile_rows)          # real blocks (last may be partial)
    bpc = pl.cdiv(blocks, NUM_CORES)           # blocks per core

    kernel = functools.partial(
        _charbonnier_kernel,
        eps=float(eps),
        full_rows=n // LANES,
        tail_cols=n % LANES,
        inv_n=1.0 / n,
        tile_rows=tile_rows,
        num_valid_blocks=blocks,
        blocks_per_core=bpc,
    )

    def in_map(c, i):
        # Clamp so duplicated / out-of-range blocks re-read the last real block;
        # their contribution is masked to zero inside the kernel.
        return (jnp.minimum(c * bpc + i, blocks - 1), 0)

    partials = pl.pallas_call(
        kernel,
        out_shape=jax.ShapeDtypeStruct((NUM_CORES, 1, 1), jnp.float32),
        grid_spec=pltpu.PrefetchScalarGridSpec(
            num_scalar_prefetch=0,
            grid=(NUM_CORES, bpc),
            in_specs=[
                pl.BlockSpec((tile_rows, LANES), in_map),
                pl.BlockSpec((tile_rows, LANES), in_map),
            ],
            out_specs=pl.BlockSpec((1, 1, 1), lambda c, i: (c, 0, 0)),
            scratch_shapes=[pltpu.VMEM((8, LANES), jnp.float32)],
        ),
        compiler_params=pltpu.CompilerParams(
            dimension_semantics=("parallel", "arbitrary"),
        ),
    )(x2, y2)
    return jnp.sum(partials)


if __name__ == "__main__":
    key = jax.random.PRNGKey(0)
    kx, ky = jax.random.split(key)
    shape = (2, 4, 16, 16)  # NCHW, as in the PyTorch module's typical use
    X = jax.random.normal(kx, shape, dtype=jnp.float32)
    Y = jax.random.normal(ky, shape, dtype=jnp.float32)

    loss = l1_charbonnier_loss(X, Y)
    jax.block_until_ready(loss)

    # reference check in plain JAX (same eps convention as the PyTorch module:
    # sqrt(diff^2 + eps), eps = 1e-6)
    ref = jnp.mean(jnp.sqrt((X - Y) ** 2 + 1e-6))
    assert jnp.allclose(loss, ref, rtol=1e-5, atol=1e-6), (loss, ref)
    print("KERNEL_OK")
</pallas_src>

<mosaic_0001>
module attributes {stable_mosaic.version = 11 : i64} {
  func.func @_charbonnier_kernel(%arg0: i32, %arg1: i32, %arg2: memref<16x128xf32, #tpu.memory_space<vmem>>, %arg3: memref<16x128xf32, #tpu.memory_space<vmem>>, %arg4: memref<1x1x1xf32, #tpu.memory_space<vmem>>, %arg5: memref<8x128xf32, #tpu.memory_space<vmem>>) attributes {dimension_semantics = [#tpu.dimension_semantics<parallel>, #tpu.dimension_semantics<arbitrary>], iteration_bounds = array<i64: 2, 1>, scalar_prefetch = 0 : i64, scratch_operands = 1 : i64, tpu.core_type = #tpu.core_type<tc>, window_params = [{transform_indices = @transform_0, window_bounds = array<i64: 16, 128>}, {transform_indices = @transform_1, window_bounds = array<i64: 16, 128>}, {transform_indices = @transform_2, window_bounds = array<i64: 1, 1, 1>}]} {
    %c1_i32 = arith.constant 1 : i32
    %0 = arith.muli %arg0, %c1_i32 : i32
    %1 = arith.addi %0, %arg1 : i32
    %c0_i32 = arith.constant 0 : i32
    %2 = arith.cmpi eq, %arg1, %c0_i32 : i32
    %3 = arith.extui %2 : i1 to i32
    %c0_i32_0 = arith.constant 0 : i32
    %4 = arith.cmpi ne, %3, %c0_i32_0 : i32
    scf.if %4 {
      %cst_10 = arith.constant 0.000000e+00 : f32
      %21 = vector.broadcast %cst_10 : f32 to vector<8x128xf32>
      %c0_11 = arith.constant 0 : index
      %c0_12 = arith.constant 0 : index
      %22 = vector.load %arg5[%c0_11, %c0_12] : memref<8x128xf32, #tpu.memory_space<vmem>>, vector<8x128xf32>
      tpu.vector_store %arg5[%c0_11, %c0_12], %21 {strides = array<i32>} : memref<8x128xf32, #tpu.memory_space<vmem>>, vector<8x128xf32>,
    } else {
    }
    %c0 = arith.constant 0 : index
    %c0_1 = arith.constant 0 : index
    %5 = vector.load %arg2[%c0, %c0_1] : memref<16x128xf32, #tpu.memory_space<vmem>>, vector<16x128xf32>
    %c0_2 = arith.constant 0 : index
    %c0_3 = arith.constant 0 : index
    %6 = vector.load %arg3[%c0_2, %c0_3] : memref<16x128xf32, #tpu.memory_space<vmem>>, vector<16x128xf32>
    %7 = arith.subf %5, %6 : vector<16x128xf32>
    %8 = arith.mulf %7, %7 : vector<16x128xf32>
    %cst = arith.constant 9.99999997E-7 : f32
    %9 = vector.broadcast %cst : f32 to vector<16x128xf32>
    %10 = arith.addf %8, %9 : vector<16x128xf32>
    %11 = math.sqrt %10 : vector<16x128xf32>
    %c0_i32_4 = arith.constant 0 : i32
    %12 = arith.cmpi slt, %1, %c0_i32_4 : i32
    %13 = arith.extui %12 : i1 to i32
    %c0_i32_5 = arith.constant 0 : i32
    %14 = arith.cmpi ne, %13, %c0_i32_5 : i32
    scf.if %14 {
      %c0_10 = arith.constant 0 : index
      %c0_11 = arith.constant 0 : index
      %21 = vector.load %arg5[%c0_10, %c0_11] : memref<8x128xf32, #tpu.memory_space<vmem>>, vector<8x128xf32>
      %22 = vector.shape_cast %11 : vector<16x128xf32> to vector<2x8x128xf32>
      %cst_12 = arith.constant dense<0.000000e+00> : vector<8x128xf32>
      %23 = vector.multi_reduction <add>, %22, %cst_12 [0] : vector<2x8x128xf32> to vector<8x128xf32>
      %24 = arith.addf %21, %23 : vector<8x128xf32>
      %c0_13 = arith.constant 0 : index
      %c0_14 = arith.constant 0 : index
      %25 = vector.load %arg5[%c0_13, %c0_14] : memref<8x128xf32, #tpu.memory_space<vmem>>, vector<8x128xf32>
      tpu.vector_store %arg5[%c0_13, %c0_14], %24 {strides = array<i32>} : memref<8x128xf32, #tpu.memory_space<vmem>>, vector<8x128xf32>,
    } else {
    }
    %c0_i32_6 = arith.constant 0 : i32
    %15 = arith.cmpi sge, %1, %c0_i32_6 : i32
    %16 = arith.extui %15 : i1 to i32
    %c0_i32_7 = arith.constant 0 : i32
    %17 = arith.cmpi ne, %16, %c0_i32_7 : i32
    scf.if %17 {
      %c16_i32 = arith.constant 16 : i32
      %21 = arith.muli %1, %c16_i32 : i32
      %22 = tpu.iota {dimensions = array<i32: 0>} : vector<16x128xi32>
      %23 = vector.broadcast %21 : i32 to vector<16x128xi32>
      %24 = arith.addi %23, %22 : vector<16x128xi32>
      %25 = tpu.iota {dimensions = array<i32: 1>} : vector<16x128xi32>
      %c16_i32_10 = arith.constant 16 : i32
      %26 = vector.broadcast %c16_i32_10 : i32 to vector<16x128xi32>
      %27 = arith.cmpi slt, %24, %26 : vector<16x128xi32>
      %c16_i32_11 = arith.constant 16 : i32
      %28 = vector.broadcast %c16_i32_11 : i32 to vector<16x128xi32>
      %29 = arith.cmpi eq, %24, %28 : vector<16x128xi32>
      %c0_i32_12 = arith.constant 0 : i32
      %30 = vector.broadcast %c0_i32_12 : i32 to vector<16x128xi32>
      %31 = arith.cmpi slt, %25, %30 : vector<16x128xi32>
      %32 = arith.andi %29, %31 : vector<16x128xi1>
      %33 = arith.ori %27, %32 : vector<16x128xi1>
      %cst_13 = arith.constant 0.000000e+00 : f32
      %34 = vector.broadcast %cst_13 : f32 to vector<16x128xf32>
      %35 = arith.select %33, %11, %34 : vector<16x128xi1>, vector<16x128xf32>
      %c0_14 = arith.constant 0 : index
      %c0_15 = arith.constant 0 : index
      %36 = vector.load %arg5[%c0_14, %c0_15] : memref<8x128xf32, #tpu.memory_space<vmem>>, vector<8x128xf32>
      %37 = vector.shape_cast %35 : vector<16x128xf32> to vector<2x8x128xf32>
      %cst_16 = arith.constant dense<0.000000e+00> : vector<8x128xf32>
      %38 = vector.multi_reduction <add>, %37, %cst_16 [0] : vector<2x8x128xf32> to vector<8x128xf32>
      %39 = arith.addf %36, %38 : vector<8x128xf32>
      %c0_17 = arith.constant 0 : index
      %c0_18 = arith.constant 0 : index
      %40 = vector.load %arg5[%c0_17, %c0_18] : memref<8x128xf32, #tpu.memory_space<vmem>>, vector<8x128xf32>
      tpu.vector_store %arg5[%c0_17, %c0_18], %39 {strides = array<i32>} : memref<8x128xf32, #tpu.memory_space<vmem>>, vector<8x128xf32>,
    } else {
    }
    %c0_i32_8 = arith.constant 0 : i32
    %18 = arith.cmpi eq, %arg1, %c0_i32_8 : i32
    %19 = arith.extui %18 : i1 to i32
    %c0_i32_9 = arith.constant 0 : i32
    %20 = arith.cmpi ne, %19, %c0_i32_9 : i32
    scf.if %20 {
      %c0_10 = arith.constant 0 : index
      %c0_11 = arith.constant 0 : index
      %21 = vector.load %arg5[%c0_10, %c0_11] : memref<8x128xf32, #tpu.memory_space<vmem>>, vector<8x128xf32>
      %22 = vector.shape_cast %21 : vector<8x128xf32> to vector<1x8x128xf32>
      %cst_12 = arith.constant dense<0.000000e+00> : vector<1xf32>
      %23 = vector.multi_reduction <add>, %22, %cst_12 [1, 2] : vector<1x8x128xf32> to vector<1xf32>
      %24 = vector.shape_cast %23 : vector<1xf32> to vector<1x1x1xf32>
      %25 = vector.extract %24[0, 0, 0] : f32 from vector<1x1x1xf32>
      %cst_13 = arith.constant 4.8828125E-4 : f32
      %26 = arith.mulf %25, %cst_13 : f32
      %27 = vector.broadcast %26 : f32 to vector<1x1x1xf32>
      %c0_14 = arith.constant 0 : index
      %c0_15 = arith.constant 0 : index
      %c0_16 = arith.constant 0 : index
      %28 = vector.load %arg4[%c0_14, %c0_15, %c0_16] : memref<1x1x1xf32, #tpu.memory_space<vmem>>, vector<1x1x1xf32>
      tpu.vector_store %arg4[%c0_14, %c0_15, %c0_16], %27 {strides = array<i32>} : memref<1x1x1xf32, #tpu.memory_space<vmem>>, vector<1x1x1xf32>,
    } else {
    }
    return
  }
  func.func @transform_0(%arg0: i32, %arg1: i32) -> (i32, i32) {
    %c1_i32 = arith.constant 1 : i32
    %0 = arith.muli %arg0, %c1_i32 : i32
    %1 = arith.addi %0, %arg1 : i32
    %c0_i32 = arith.constant 0 : i32
    %2 = arith.minsi %1, %c0_i32 : i32
    %c0_i32_0 = arith.constant 0 : i32
    %c0_i32_1 = arith.constant 0 : i32
    return %2, %c0_i32_0 : i32, i32
  }
  func.func @transform_1(%arg0: i32, %arg1: i32) -> (i32, i32) {
    %c1_i32 = arith.constant 1 : i32
    %0 = arith.muli %arg0, %c1_i32 : i32
    %1 = arith.addi %0, %arg1 : i32
    %c0_i32 = arith.constant 0 : i32
    %2 = arith.minsi %1, %c0_i32 : i32
    %c0_i32_0 = arith.constant 0 : i32
    %c0_i32_1 = arith.constant 0 : i32
    return %2, %c0_i32_0 : i32, i32
  }
  func.func @transform_2(%arg0: i32, %arg1: i32) -> (i32, i32, i32) {
    %c0_i32 = arith.constant 0 : i32
    %c0_i32_0 = arith.constant 0 : i32
    %c0_i32_1 = arith.constant 0 : i32
    return %arg0, %c0_i32, %c0_i32_0 : i32, i32, i32
  }
}

</mosaic_0001>

<llo_original>
// kernel: tpu_custom_call.1
$region0: #{tpu_custom_call.1}
  #allocation0 [shape = 'u32[]', space=smem, size = 0x4, offset = 0x4, fixed_abs, tag = 'smem constant byte address 0x4 - core index']
  #allocation1 [shape = 'u32[144,128]{1,0:T(1,128)}', space=vmem, size = 0x12000, scoped, tag = 'internal scratch']
  #allocation2 [shape = 'f32[8,128]{1,0:T(8,128)}', space=vmem, size = 0x1000, scoped, tag = 'scratch operand']
  %s0 = inlined_call_operand.hbm [shape: f32[16,128], index: 0, kind: input, shape index: {}]
  %s1 = inlined_call_operand.hbm [shape: f32[16,128], index: 1, kind: input, shape index: {}]
  %s2 = inlined_call_operand.vmem [shape: f32[2,1,1], index: 2, kind: output, shape index: {}]
  %s3 = sld [smem:[#allocation0]]
  $region65: #{tpu_custom_call.1} parent=0
    _
  %s5 = ssub.s32 1, %s3
  %s6 = scalar_select 0, %s5, %s3
  $region1: #{tpu_custom_call.1} parent=0
    #allocation3 [shape = 'u8[16384]{0}', space=vmem, size = 0x4000, scoped, tag = 'input window, operand 0']
    #allocation4 [shape = 's32[2]{0}', space=sflag, size = 0x8, scoped, tag = 'scoped memory for tpu_custom_call.1']
    #allocation5 [shape = 'u8[16384]{0}', space=vmem, size = 0x4000, scoped, tag = 'input window, operand 1']
    #allocation6 [shape = 's32[2]{0}', space=sflag, size = 0x8, scoped, tag = 'scoped memory for tpu_custom_call.1']
    %7 = vsyncpa [#allocation4], 0
    %s8 = scalar_lea.sflag [#allocation4], 1
    %9 = vsyncpa %s8, 0
    %10 = vsyncpa [#allocation6], 0
    %s11 = scalar_lea.sflag [#allocation6], 1
    %12 = vsyncpa %s11, 0
    loop: start=0, step=1, limit=4
    $region2: #{tpu_custom_call.1} parent=1 // loop_pre_header
      _
    $region3: #{tpu_custom_call.1} parent=1 // loop_header
      %s14 = sphi 0, %s18
      %p15 = scmp.ge.s32.totalorder %s14, 4
      %s21 = sphi 0, %s33
      %s22 = sphi 0, %s29
      %s23 = sphi 0, %s21
      %s24 = sphi 0, %s22
      %s25 = sphi 0, %s23
      %s26 = sphi 0, %s24
      %s42 = sphi 0, %s44
      %s45 = sphi 0, %s42
      %s46 = sphi 0, %s45
      %s62 = sphi 0, %s46
      %s74 = sphi 0, %s76
      %s77 = sphi 0, %s74
      %s78 = sphi 0, %s77
      %s94 = sphi 0, %s78
      %s100 = sphi 0, %s102
      %s103 = sphi 0, %s100
      %s104 = sphi 0, %s103
      %s120 = sphi 0, %s104
    $region4: #{tpu_custom_call.1} parent=1 // loop_header_branch
      %17 = sbr.rel (%p15) target = $region8
    $region5: #{tpu_custom_call.1} parent=1 // loop_body
      %s19 = ssub.s32 %s14, 1
      %s20 = ssub.s32 %s14, 2
      %s27 = sadd.s32 1, %s22
      %p28 = scmp.ge.s32.totalorder %s27, 1
      %s29 = scalar_select %p28, 0, %s27
      %s30 = sadd.s32 1, %s21
      %s31 = scalar_select %p28, %s30, %s21
      %p32 = scmp.ge.s32.totalorder %s31, 2
      %s33 = scalar_select %p32, 0, %s31
      %s34 = sadd.s32 %s21, %s22
      %p35 = scmp.lt.s32.totalorder %s34, 0
      %s36 = scalar_select %p35, %s34, 0
      %s37 = sadd.s32 %s33, %s29
      %p38 = scmp.lt.s32.totalorder %s37, 0
      %s39 = scalar_select %p38, %s37, 0
      %s40 = ssub.s32 %s36, %s39
      %p41 = scmp.eq.s32.totalorder %s40, 0
      %s43 = sadd.s32 %s42, 1
      %s44 = scalar_select %p41, %s42, %s43
      %p47 = pneg %p41
      %p48 = scmp.eq.s32.totalorder %s14, 1
      %p49 = por %p47, %p48
      %p50 = scmp.ne.s32.totalorder %s42, %s45
      %p51 = scmp.eq.s32.totalorder %s14, 0
      %p52 = por %p50, %p51
      %p53 = scmp.ne.s32.totalorder %s42, %s45
      %p54 = scmp.eq.s32.totalorder %s19, 1
      %p55 = por %p53, %p54
      %p56 = scmp.ne.s32.totalorder %s45, %s46
      %p57 = scmp.eq.s32.totalorder %s19, 0
      %p58 = por %p56, %p57
      %p59 = scmp.ne.s32.totalorder %s45, %s46
      %p60 = scmp.eq.s32.totalorder %s20, 1
      %p61 = por %p59, %p60
      %p63 = scmp.ne.s32.totalorder %s46, %s62
      %p64 = scmp.eq.s32.totalorder %s20, 0
      %p65 = por %p63, %p64
      %s66 = sadd.s32 %s21, %s22
      %p67 = scmp.lt.s32.totalorder %s66, 0
      %s68 = scalar_select %p67, %s66, 0
      %s69 = sadd.s32 %s33, %s29
      %p70 = scmp.lt.s32.totalorder %s69, 0
      %s71 = scalar_select %p70, %s69, 0
      %s72 = ssub.s32 %s68, %s71
      %p73 = scmp.eq.s32.totalorder %s72, 0
      %s75 = sadd.s32 %s74, 1
      %s76 = scalar_select %p73, %s74, %s75
      %p79 = pneg %p73
      %p80 = scmp.eq.s32.totalorder %s14, 1
      %p81 = por %p79, %p80
      %p82 = scmp.ne.s32.totalorder %s74, %s77
      %p83 = scmp.eq.s32.totalorder %s14, 0
      %p84 = por %p82, %p83
      %p85 = scmp.ne.s32.totalorder %s74, %s77
      %p86 = scmp.eq.s32.totalorder %s19, 1
      %p87 = por %p85, %p86
      %p88 = scmp.ne.s32.totalorder %s77, %s78
      %p89 = scmp.eq.s32.totalorder %s19, 0
      %p90 = por %p88, %p89
      %p91 = scmp.ne.s32.totalorder %s77, %s78
      %p92 = scmp.eq.s32.totalorder %s20, 1
      %p93 = por %p91, %p92
      %p95 = scmp.ne.s32.totalorder %s78, %s94
      %p96 = scmp.eq.s32.totalorder %s20, 0
      %p97 = por %p95, %p96
      %s98 = ssub.s32 %s21, %s33
      %p99 = scmp.eq.s32.totalorder %s98, 0
      %s101 = sadd.s32 %s100, 1
      %s102 = scalar_select %p99, %s100, %s101
      %p105 = pneg %p99
      %p106 = scmp.eq.s32.totalorder %s14, 1
      %p107 = por %p105, %p106
      %p108 = scmp.ne.s32.totalorder %s100, %s103
      %p109 = scmp.eq.s32.totalorder %s14, 0
      %p110 = por %p108, %p109
      %p111 = scmp.ne.s32.totalorder %s100, %s103
      %p112 = scmp.eq.s32.totalorder %s19, 1
      %p113 = por %p111, %p112
      %p114 = scmp.ne.s32.totalorder %s103, %s104
      %p115 = scmp.eq.s32.totalorder %s19, 0
      %p116 = por %p114, %p115
      %p117 = scmp.ne.s32.totalorder %s103, %s104
      %p118 = scmp.eq.s32.totalorder %s20, 1
      %p119 = por %p117, %p118
      %p121 = scmp.ne.s32.totalorder %s104, %s120
      %p122 = scmp.eq.s32.totalorder %s20, 0
      %p123 = por %p121, %p122
      %p124 = scmp.le.s32.totalorder 1, %s14
      %p125 = scmp.lt.s32.totalorder %s14, 3
      %p126 = pnand %p124, %p125
      %p127 = pneg %p126
      // Predicated region
      $region9: #{tpu_custom_call.1} parent=5 // pred_check
        _
      $region10: #{tpu_custom_call.1} parent=5 // pred_check_branch
        %129 = sbr.rel (%p126) target = $region12
      $region11: #{tpu_custom_call.1} parent=5 // pred_region
        %s130 = ssub.s32 %s14, 1
      $region12: #{tpu_custom_call.1} parent=5 // pred_fallthru
        _
      %p131 = scmp.lt.s32.totalorder %s14, 2
      // Predicated region
      $region13: #{tpu_custom_call.1} parent=5 // pred_check
        %p132 = pneg %p131
      $region14: #{tpu_custom_call.1} parent=5 // pred_check_branch
        %134 = sbr.rel (%p132) target = $region16
      $region15: #{tpu_custom_call.1} parent=5 // pred_region
        // Predicated region
        $region17: #{tpu_custom_call.1} parent=15 // pred_check
          %p135 = pneg %p52
        $region18: #{tpu_custom_call.1} parent=15 // pred_check_branch
          %137 = sbr.rel (%p135) target = $region20
        $region19: #{tpu_custom_call.1} parent=15 // pred_region
          %s138 = sand.u32 %s42, 1
          %s139 = scalar_lea.sflag [#allocation4], %s138
          %s140 = sand.u32 %s42, 1
          %s141 = smul.addr %s140, 16
          %s142 = scalar_lea.vmem [#allocation3], %s141
          %s143 = sadd.s32 %s21, %s22
          %p144 = scmp.lt.s32.totalorder %s143, 0
          %s145 = scalar_select %p144, %s143, 0
          %s146 = smul.u32 2, %s145
          %s148 = ssub.s32 256, 256
          %149 = vsyncadd %s139, %s148
          %s150 = smul.addr %s146, 128
          %s151 = scalar_lea.hbm %s0, %s150
          %s152 = sshll.u32 %s142, 4
          %s153 = int_to_ptr.vmem [resolvable:$true] %s152
          %158 = dma.hbm_to_vmem [thread:$0]  %s151, 256, %s153, %s139, 128, 128, 8
        $region20: #{tpu_custom_call.1} parent=15 // pred_fallthru
          _
        // Predicated region
        $region21: #{tpu_custom_call.1} parent=15 // pred_check
          %p159 = pneg %p84
        $region22: #{tpu_custom_call.1} parent=15 // pred_check_branch
          %161 = sbr.rel (%p159) target = $region24
        $region23: #{tpu_custom_call.1} parent=15 // pred_region
          %s162 = sand.u32 %s74, 1
          %s163 = scalar_lea.sflag [#allocation6], %s162
          %s164 = sand.u32 %s74, 1
          %s165 = smul.addr %s164, 16
          %s166 = scalar_lea.vmem [#allocation5], %s165
          %s167 = sadd.s32 %s21, %s22
          %p168 = scmp.lt.s32.totalorder %s167, 0
          %s169 = scalar_select %p168, %s167, 0
          %s170 = smul.u32 2, %s169
          %s172 = ssub.s32 256, 256
          %173 = vsyncadd %s163, %s172
          %s174 = smul.addr %s170, 128
          %s175 = scalar_lea.hbm %s1, %s174
          %s176 = sshll.u32 %s166, 4
          %s177 = int_to_ptr.vmem [resolvable:$true] %s176
          %182 = dma.hbm_to_vmem [thread:$0]  %s175, 256, %s177, %s163, 128, 128, 8
        $region24: #{tpu_custom_call.1} parent=15 // pred_fallthru
          _
      $region16: #{tpu_custom_call.1} parent=5 // pred_fallthru
        _
      %p183 = scmp.le.s32.totalorder 1, %s14
      %p184 = scmp.lt.s32.totalorder %s14, 3
      %p185 = pnand %p183, %p184
      %p186 = pneg %p185
      // Predicated region
      $region25: #{tpu_custom_call.1} parent=5 // pred_check
        _
      $region26: #{tpu_custom_call.1} parent=5 // pred_check_branch
        %188 = sbr.rel (%p185) target = $region28
      $region27: #{tpu_custom_call.1} parent=5 // pred_region
        %s189 = ssub.s32 %s14, 1
        %s190 = sand.u32 %s45, 1
        %s191 = scalar_lea.sflag [#allocation4], %s190
        %s192 = sand.u32 %s45, 1
        %s193 = smul.addr %s192, 16
        %s194 = scalar_lea.vmem [#allocation3], %s193
        // Predicated region
        $region29: #{tpu_custom_call.1} parent=27 // pred_check
          %p195 = pneg %p58
        $region30: #{tpu_custom_call.1} parent=27 // pred_check_branch
          %197 = sbr.rel (%p195) target = $region32
        $region31: #{tpu_custom_call.1} parent=27 // pred_region
          %198 = dma.done %s191, 256
        $region32: #{tpu_custom_call.1} parent=27 // pred_fallthru
          _
        %s199 = sand.u32 %s77, 1
        %s200 = scalar_lea.sflag [#allocation6], %s199
        %s201 = sand.u32 %s77, 1
        %s202 = smul.addr %s201, 16
        %s203 = scalar_lea.vmem [#allocation5], %s202
        // Predicated region
        $region33: #{tpu_custom_call.1} parent=27 // pred_check
          %p204 = pneg %p90
        $region34: #{tpu_custom_call.1} parent=27 // pred_check_branch
          %206 = sbr.rel (%p204) target = $region36
        $region35: #{tpu_custom_call.1} parent=27 // pred_region
          %207 = dma.done %s200, 256
        $region36: #{tpu_custom_call.1} parent=27 // pred_fallthru
          _
        %s208 = sand.u32 %s45, 1
        %s209 = scalar_lea.sflag [#allocation4], %s208
        %s210 = sand.u32 %s45, 1
        %s211 = smul.addr %s210, 16
        %s212 = scalar_lea.vmem [#allocation3], %s211
        %p213 = pneg %p58
        %p214 = pneg %p55
        %s215 = sand.u32 %s77, 1
        %s216 = scalar_lea.sflag [#allocation6], %s215
        %s217 = sand.u32 %s77, 1
        %s218 = smul.addr %s217, 16
        %s219 = scalar_lea.vmem [#allocation5], %s218
        %p220 = pneg %p90
        %p221 = pneg %p87
        %p222 = pneg %p116
        %p223 = pneg %p113
        %p224 = scmp.lt.s32.totalorder %s23, 1
        %s225 = scalar_select %p224, %s23, 1
        %s226 = scalar_lea.vmem %s2, %s225
        %s227 = sadd.s32 %s23, %s24
        %p228 = scmp.lt.s32.totalorder %s227, 0
        %s229 = scalar_select %p228, %s227, 0
        %s230 = smul.u32 2, %s229
        %s231 = sadd.s32 %s23, %s24
        %p232 = scmp.lt.s32.totalorder %s231, 0
        %s233 = scalar_select %p232, %s231, 0
        %s234 = smul.u32 2, %s233
        %p235 = scmp.lt.s32.totalorder %s23, 1
        %s236 = scalar_select %p235, %s23, 1
        %s237 = scalar_lea.vmem %s2, %s236
        %s238 = sadd.s32 %s23, %s24
        %p239 = scmp.eq.s32.totalorder %s24, 0
        // Predicated region
        $region37: #{tpu_custom_call.1} parent=27 // pred_check
          %p240 = pneg %p239
        $region38: #{tpu_custom_call.1} parent=27 // pred_check_branch
          %242 = sbr.rel (%p240) target = $region40
        $region39: #{tpu_custom_call.1} parent=27 // pred_region
          %243 = vst [vmem:[#allocation2] sm:$0xff] 0.0
        $region40: #{tpu_custom_call.1} parent=27 // pred_fallthru
          _
        %v244 = vld [vmem:[%s194] sm:$0xff]
        %v245 = vld [vmem:[%s194 + $0x8] sm:$0xff]
        %v246 = vld [vmem:[%s203] sm:$0xff]
        %v247 = vld [vmem:[%s203 + $0x8] sm:$0xff]
        %v248 = vsub.f32 %v244, %v246
        %v249 = vsub.f32 %v245, %v247
        %v250 = vmul.f32 %v248, %v248
        %v251 = vmul.f32 %v249, %v249
        %v252 = vadd.f32 %v250, 1e-06
        %v253 = vadd.f32 %v251, 1e-06
        %v254 = vrsqrt.pop %v252
        %v255 = vmul.f32 %v252, %v254
        %vm256 = vcmp.eq.f32.partialorder %v252, inf
        %v257 = vsel %vm256, %v252, %v255
        %vm258 = vcmp.eq.f32.partialorder %v252, 0.0
        %v259 = vand.u32 %v252, 2147483648
        %v260 = vsel %vm258, %v259, %v257
        %v261 = vrsqrt.pop %v253
        %v262 = vmul.f32 %v253, %v261
        %vm263 = vcmp.eq.f32.partialorder %v253, inf
        %v264 = vsel %vm263, %v253, %v262
        %vm265 = vcmp.eq.f32.partialorder %v253, 0.0
        %v266 = vand.u32 %v253, 2147483648
        %v267 = vsel %vm265, %v266, %v264
        %p268 = scmp.lt.s32.totalorder %s238, 0
        // Predicated region
        $region41: #{tpu_custom_call.1} parent=27 // pred_check
          %p269 = pneg %p268
        $region42: #{tpu_custom_call.1} parent=27 // pred_check_branch
          %271 = sbr.rel (%p269) target = $region44
        $region43: #{tpu_custom_call.1} parent=27 // pred_region
          %v272 = vld [vmem:[#allocation2] sm:$0xff]
          %v273 = vadd.f32 %v260, %v267
          %v274 = vadd.f32 %v272, %v273
          %275 = vst [vmem:[#allocation2] sm:$0xff] %v274
        $region44: #{tpu_custom_call.1} parent=27 // pred_fallthru
          _
        %p276 = scmp.ge.s32.totalorder %s238, 0
        // Predicated region
        $region45: #{tpu_custom_call.1} parent=27 // pred_check
          %p277 = pneg %p276
        $region46: #{tpu_custom_call.1} parent=27 // pred_check_branch
          %279 = sbr.rel (%p277) target = $region48
        $region47: #{tpu_custom_call.1} parent=27 // pred_region
          %s280 = smul.u32 %s238, 16
          %v281 = vlaneseq
          %v282 = vshrl.u32 %v281, 7
          %v283 = vadd.s32 %v282, 8
          %v284 = vstv %s280
          %v285 = vadd.s32 %v284, %v282
          %v286 = vadd.s32 %v284, %v283
          %v287 = vlaneseq
          %v288 = vand.u32 %v287, 127
          %vm289 = vcmp.lt.s32.totalorder %v285, 16
          %vm290 = vcmp.lt.s32.totalorder %v286, 16
          %vm291 = vcmp.eq.s32.totalorder %v285, 16
          %vm292 = vcmp.eq.s32.totalorder %v286, 16
          %vm293 = vcmp.lt.s32.totalorder %v288, 0
          %vm294 = vmand %vm291, %vm293
          %vm295 = vmand %vm292, %vm293
          %vm296 = vmor %vm289, %vm294
          %vm297 = vmor %vm290, %vm295
          %v298 = vsel %vm296, %v260, 0.0
          %v299 = vsel %vm297, %v267, 0.0
          %v300 = vld [vmem:[#allocation2] sm:$0xff]
          %v301 = vadd.f32 %v298, %v299
          %v302 = vadd.f32 %v300, %v301
          %303 = vst [vmem:[#allocation2] sm:$0xff] %v302
        $region48: #{tpu_custom_call.1} parent=27 // pred_fallthru
          _
        // Predicated region
        $region49: #{tpu_custom_call.1} parent=27 // pred_check
          %p304 = pneg %p239
        $region50: #{tpu_custom_call.1} parent=27 // pred_check_branch
          %306 = sbr.rel (%p304) target = $region52
        $region51: #{tpu_custom_call.1} parent=27 // pred_region
          %v307 = vld [vmem:[#allocation2] sm:$0xff]
          %308 = vadd.xlane.f32.xlu0 %v307
          %v309 = vpop.xlane.xlu0 %308
          %v310 = vrot.slane %v309, 4
          %v311 = vadd.f32 %v309, %v310
          %v312 = vrot.slane %v311, 2
          %v313 = vadd.f32 %v311, %v312
          %v314 = vrot.slane %v313, 1
          %v315 = vadd.f32 %v313, %v314
          %s316 = vtos %v315
          %s317 = smul.f32 %s316, 0.00048828125
          %v318 = vstv %s317
          %vm319 = vcmask 0
          %320 = vst.msk [vmem:[%s237] sm:$0x1] %vm319, %v318
        $region52: #{tpu_custom_call.1} parent=27 // pred_fallthru
          _
        %p321 = scmp.lt.s32.totalorder %s23, 1
        %s322 = scalar_select %p321, %s23, 1
        %s323 = scalar_lea.vmem %s2, %s322
        // Predicated region
        $region53: #{tpu_custom_call.1} parent=27 // pred_check
          %p324 = pneg %p113
        $region54: #{tpu_custom_call.1} parent=27 // pred_check_branch
          %326 = sbr.rel (%p324) target = $region56
        $region55: #{tpu_custom_call.1} parent=27 // pred_region
          _
        $region56: #{tpu_custom_call.1} parent=27 // pred_fallthru
          _
      $region28: #{tpu_custom_call.1} parent=5 // pred_fallthru
        _
      %p327 = scmp.le.s32.totalorder 2, %s14
      // Predicated region
      $region57: #{tpu_custom_call.1} parent=5 // pred_check
        %p328 = pneg %p327
      $region58: #{tpu_custom_call.1} parent=5 // pred_check_branch
        %330 = sbr.rel (%p328) target = $region60
      $region59: #{tpu_custom_call.1} parent=5 // pred_region
        %s331 = ssub.s32 %s14, 2
        // Predicated region
        $region61: #{tpu_custom_call.1} parent=59 // pred_check
          %p332 = pneg %p119
        $region62: #{tpu_custom_call.1} parent=59 // pred_check_branch
          %334 = sbr.rel (%p332) target = $region64
        $region63: #{tpu_custom_call.1} parent=59 // pred_region
          %p335 = scmp.lt.s32.totalorder %s25, 1
          %s336 = scalar_select %p335, %s25, 1
          %s337 = scalar_lea.vmem %s2, %s336
        $region64: #{tpu_custom_call.1} parent=59 // pred_fallthru
          _
      $region60: #{tpu_custom_call.1} parent=5 // pred_fallthru
        _
    $region6: #{tpu_custom_call.1} parent=1 // loop_footer
      %s18 = sadd.s32 1, %s14
    $region7: #{tpu_custom_call.1} parent=1 // loop_footer_branch
      %13 = sbr.rel target = $region3
    $region8: #{tpu_custom_call.1} parent=1 // loop_exit
      _
    %338 = vsyncpa [#allocation4], 1
    %s339 = scalar_lea.sflag [#allocation4], 1
    %340 = vsyncpa %s339, 1
    %341 = vsyncpa [#allocation6], 1
    %s342 = scalar_lea.sflag [#allocation6], 1
    %343 = vsyncpa %s342, 1

</llo_original>
